<compile_context>
chip_gen: v6e
topology: v6e:2x2x1
jax: 0.10.0
libtpu: 0.0.40
codegen_flags: <defaults>
</compile_context>

<pallas_src>
import functools

import jax
import jax.numpy as jnp
from jax import lax
from jax.experimental import pallas as pl
from jax.experimental.pallas import tpu as pltpu


_LANE = 128
_TARGET_TILE_ELEMS = 1024 * 512          # (1024, 512) f32 tile = 2 MiB
_FUSED_VMEM_BUDGET = 8 * 1024 * 1024     # fused-path working-set budget (bytes)
_NUM_SPLITS = 2                          # pass-1 reduction split (both v7x TCs;
                                         # runs sequentially on 1-TC chips)


# ---------------------------------------------------------------------------
# Kernels
# ---------------------------------------------------------------------------

def _fused_kernel(x_ref, o_ref, *, inv_n):
    """Whole slab resident in VMEM: read once, mean + subtract, write once."""
    x = x_ref[...].astype(jnp.float32)
    mean = jnp.sum(x) * inv_n
    o_ref[...] = (x - mean).astype(o_ref.dtype)


def _sum_kernel(x_ref, part_ref, acc_ref, *, valid_rows, block_rows,
                tiles_per_split):
    """One split's partial sum over its row tiles.  grid = (split, tile)."""
    p = pl.program_id(0)
    i = pl.program_id(1)

    @pl.when(i == 0)
    def _():
        acc_ref[...] = jnp.zeros_like(acc_ref)

    x = x_ref[...].astype(jnp.float32)                    # (block_rows, cols)

    # Mask rows past the true extent: covers the ragged last tile and, when
    # the tile count is odd, the clamped/overhanging tile of the last split.
    tile = p * tiles_per_split + i
    row0 = tile * block_rows
    row_ids = row0 + lax.broadcasted_iota(jnp.int32, x.shape, 0)
    x = jnp.where(row_ids < valid_rows, x, 0.0)

    # Vector accumulator: per-step work stays on the VALU (plus a small
    # sublane fold); no loop-carried (1,1) scalar store, better accuracy.
    acc_ref[...] += jnp.sum(x, axis=0, keepdims=True)     # (1, cols)

    @pl.when(i == tiles_per_split - 1)
    def _():
        part_ref[...] = jnp.sum(acc_ref[...]).reshape(1, 1, 1)


def _subtract_kernel(parts_ref, x_ref, o_ref, *, inv_n, num_splits,
                     out_is_f32):
    """Tiled (x - mean); mean computed in-kernel from the SMEM partial sums."""
    total = parts_ref[0]
    for s in range(1, num_splits):                        # static unroll (tiny)
        total = total + parts_ref[s]
    mean = total * inv_n                                  # f32 scalar
    x = x_ref[...]
    if out_is_f32:
        o_ref[...] = x - mean
    else:
        o_ref[...] = (x.astype(jnp.float32) - mean).astype(o_ref.dtype)


# ---------------------------------------------------------------------------
# Drivers
# ---------------------------------------------------------------------------

def _centered_tiled(x2d, out_dtype, out_is_f32, inv_n):
    """Two-pass tiled path for a lane-dense (rows, cols) slab."""
    rows, cols = x2d.shape
    block_rows = max(8, min(_TARGET_TILE_ELEMS // cols, (rows // 8) * 8))
    num_tiles = pl.cdiv(rows, block_rows)
    num_splits = _NUM_SPLITS if num_tiles >= _NUM_SPLITS else 1
    tiles_per_split = pl.cdiv(num_tiles, num_splits)

    if num_splits * tiles_per_split == num_tiles:
        sum_in_map = lambda p, i: (p * tiles_per_split + i, 0)
    else:
        # Last split overhangs by one tile: clamp the block index so the DMA
        # stays in bounds; the kernel's row mask zeroes the duplicated rows.
        sum_in_map = lambda p, i: (
            jnp.minimum(p * tiles_per_split + i, num_tiles - 1), 0)

    # ---- Pass 1: per-split partial sums (uses both TensorCores on v7x). ----
    parts = pl.pallas_call(
        functools.partial(_sum_kernel, valid_rows=rows, block_rows=block_rows,
                          tiles_per_split=tiles_per_split),
        out_shape=jax.ShapeDtypeStruct((num_splits, 1, 1), jnp.float32),
        grid=(num_splits, tiles_per_split),
        in_specs=[pl.BlockSpec((block_rows, cols), sum_in_map)],
        out_specs=pl.BlockSpec((1, 1, 1), lambda p, i: (p, 0, 0)),
        scratch_shapes=[pltpu.VMEM((1, cols), jnp.float32)],
        compiler_params=pltpu.CompilerParams(
            dimension_semantics=("parallel", "arbitrary")),
    )(x2d)

    # ---- Pass 2: tiled subtract; mean formed in-kernel from the raw sums. --
    out2d = pl.pallas_call(
        functools.partial(_subtract_kernel, inv_n=inv_n,
                          num_splits=num_splits, out_is_f32=out_is_f32),
        out_shape=jax.ShapeDtypeStruct((rows, cols), out_dtype),
        grid=(num_tiles,),
        in_specs=[
            pl.BlockSpec(memory_space=pltpu.MemorySpace.SMEM),  # partial sums
            pl.BlockSpec((block_rows, cols), lambda i: (i, 0)),
        ],
        out_specs=pl.BlockSpec((block_rows, cols), lambda i: (i, 0)),
        compiler_params=pltpu.CompilerParams(
            dimension_semantics=("parallel",)),
    )(parts.reshape(num_splits), x2d)
    return out2d


def centered_layer(x):
    """X - X.mean() over all elements (torch CenteredLayer forward)."""
    orig_shape = x.shape
    orig_dtype = x.dtype
    n_total = int(x.size)
    if n_total == 0:
        return x
    out_is_f32 = orig_dtype == jnp.float32
    inv_n = 1.0 / float(n_total)            # mean uses the TRUE element count
    itemsize = orig_dtype.itemsize

    flat = x.reshape(-1)

    # Pick a 2D view (a free reshape — never a padded copy on the common path).
    if n_total % _LANE == 0:
        if n_total % 512 == 0:
            cols = 512
        elif n_total % 256 == 0:
            cols = 256
        else:
            cols = _LANE
        x2d = flat.reshape(n_total // cols, cols)         # lane-dense slab
    elif x.ndim >= 2:
        x2d = x.reshape(-1, orig_shape[-1])               # collapse leading dims
    else:
        x2d = flat.reshape(1, n_total)

    # VMEM footprint of the slab after (8, 128) layout padding.
    r, c = x2d.shape
    padded_elems = (pl.cdiv(r, 8) * 8) * (pl.cdiv(c, _LANE) * _LANE)
    fused_bytes = padded_elems * (2 * itemsize + 4)       # in + out + f32 temp

    if fused_bytes <= _FUSED_VMEM_BUDGET:
        # ---- Fused fast path: one kernel, ~2N HBM traffic, one launch. ----
        out2d = pl.pallas_call(
            functools.partial(_fused_kernel, inv_n=inv_n),
            out_shape=jax.ShapeDtypeStruct(x2d.shape, orig_dtype),
        )(x2d)
        return out2d.reshape(orig_shape)

    if n_total % _LANE == 0:
        # ---- Tiled two-pass path: no padding, ragged tiles masked. ----
        out2d = _centered_tiled(x2d, orig_dtype, out_is_f32, inv_n)
        return out2d.reshape(orig_shape)

    # Rare fallback: large input whose element count is not a multiple of 128.
    # TODO(synk): replace with element-masked 1-D tiling to drop the pad/slice
    # copies (typical ML shapes never reach this branch).
    cols = 512
    pad = (-n_total) % cols
    flat_p = jnp.pad(flat, (0, pad))                      # zeros don't change the sum
    x2d = flat_p.reshape((n_total + pad) // cols, cols)
    out2d = _centered_tiled(x2d, orig_dtype, out_is_f32, inv_n)
    return out2d.reshape(-1)[:n_total].reshape(orig_shape)


if __name__ == "__main__":
    key = jax.random.PRNGKey(0)
    k1, k2, k3 = jax.random.split(key, 3)

    # 1) Small NCHW input (fused single-kernel path).
    x = jax.random.normal(k1, (2, 4, 16, 16), dtype=jnp.float32)
    y = jax.block_until_ready(centered_layer(x))
    y_ref = x - jnp.mean(x)
    assert y.shape == x.shape and y.dtype == x.dtype
    assert jnp.allclose(y, y_ref, atol=1e-5, rtol=1e-5)
    assert abs(float(jnp.mean(y))) < 1e-5

    # 2) Larger input that exercises the tiled two-pass path (odd tile count,
    #    ragged last tile, 2-way split of the reduction).
    x_l = jax.random.normal(k2, (5, 512, 512), dtype=jnp.float32)
    y_l = jax.block_until_ready(centered_layer(x_l))
    y_l_ref = x_l - jnp.mean(x_l)
    assert y_l.shape == x_l.shape and y_l.dtype == x_l.dtype
    assert jnp.allclose(y_l, y_l_ref, atol=1e-5, rtol=1e-5)
    assert abs(float(jnp.mean(y_l))) < 1e-5

    # 3) Ragged element count (not a multiple of 128) — fused full-block path.
    x_r = jax.random.normal(k3, (3, 5, 7), dtype=jnp.float32)
    y_r = jax.block_until_ready(centered_layer(x_r))
    y_r_ref = x_r - jnp.mean(x_r)
    assert y_r.shape == x_r.shape and y_r.dtype == x_r.dtype
    assert jnp.allclose(y_r, y_r_ref, atol=1e-5, rtol=1e-5)

    print("KERNEL_OK")
</pallas_src>

<mosaic_0001>
module attributes {stable_mosaic.version = 11 : i64} {
  func.func @_fused_kernel(%arg0: memref<4x512xf32, #tpu.memory_space<vmem>>, %arg1: memref<4x512xf32, #tpu.memory_space<vmem>>) attributes {dimension_semantics = [], scalar_prefetch = 0 : i64, scratch_operands = 0 : i64, tpu.core_type = #tpu.core_type<tc>} {
    %c0 = arith.constant 0 : index
    %c0_0 = arith.constant 0 : index
    %0 = vector.load %arg0[%c0, %c0_0] : memref<4x512xf32, #tpu.memory_space<vmem>>, vector<4x512xf32>
    %1 = vector.shape_cast %0 : vector<4x512xf32> to vector<1x4x512xf32>
    %cst = arith.constant dense<0.000000e+00> : vector<1xf32>
    %2 = vector.multi_reduction <add>, %1, %cst [1, 2] : vector<1x4x512xf32> to vector<1xf32>
    %3 = vector.shape_cast %2 : vector<1xf32> to vector<1x1x1xf32>
    %4 = vector.extract %3[0, 0, 0] : f32 from vector<1x1x1xf32>
    %cst_1 = arith.constant 4.8828125E-4 : f32
    %5 = arith.mulf %4, %cst_1 : f32
    %6 = vector.broadcast %5 : f32 to vector<4x512xf32>
    %7 = arith.subf %0, %6 : vector<4x512xf32>
    %c0_2 = arith.constant 0 : index
    %c0_3 = arith.constant 0 : index
    %8 = vector.load %arg1[%c0_2, %c0_3] : memref<4x512xf32, #tpu.memory_space<vmem>>, vector<4x512xf32>
    tpu.vector_store %arg1[%c0_2, %c0_3], %7 {strides = array<i32>} : memref<4x512xf32, #tpu.memory_space<vmem>>, vector<4x512xf32>,
    return
  }
}

</mosaic_0001>

<llo_original>
// kernel: tpu_custom_call.1
$region0: #{tpu_custom_call.1}
  #allocation0 [shape = 'u32[]', space=smem, size = 0x4, offset = 0x4, fixed_abs, tag = 'smem constant byte address 0x4 - core index']
  #allocation1 [shape = 'u32[144,128]{1,0:T(1,128)}', space=vmem, size = 0x12000, scoped, tag = 'internal scratch']
  %s0 = inlined_call_operand.hbm [shape: f32[4,512], index: 0, kind: input, shape index: {}]
  %s1 = inlined_call_operand.hbm [shape: f32[4,512], index: 1, kind: output, shape index: {}]
  %s2 = sld [smem:[#allocation0]]
  $region18: #{tpu_custom_call.1} parent=0
    _
  %s4 = ssub.s32 1, %s2
  %s5 = scalar_select 0, %s4, %s2
  $region1: #{tpu_custom_call.1} parent=0
    #allocation2 [shape = 'u8[8192]{0}', space=vmem, size = 0x2000, scoped, tag = 'input window, operand 0, single buffered']
    #allocation3 [shape = 's32[1]{0}', space=sflag, size = 0x4, scoped, tag = 'scoped memory for tpu_custom_call.1']
    #allocation4 [shape = 's32[1]{0}', space=sflag, size = 0x4, scoped, tag = 'scoped memory for tpu_custom_call.1']
    #allocation5 [shape = 'u8[8192]{0}', space=vmem, size = 0x2000, scoped, tag = 'output window, operand 0, single buffered']
    %6 = vsyncpa [#allocation3], 0
    %7 = vsyncpa [#allocation4], 0
    // Predicated region
    $region2: #{tpu_custom_call.1} parent=1 // pred_check
      _
    $region3: #{tpu_custom_call.1} parent=1 // pred_check_branch
      %9 = sbr.rel (0) target = $region5
    $region4: #{tpu_custom_call.1} parent=1 // pred_region
      %s11 = ssub.s32 256, 256
      %12 = vsyncadd [#allocation3], %s11
      %s14 = sshll.u32 [#allocation2], 4
      %s15 = int_to_ptr.vmem [resolvable:$true] %s14
      %17 = dma.hbm_to_vmem [thread:$0]  %s0, 256, %s15, [#allocation3]
    $region5: #{tpu_custom_call.1} parent=1 // pred_fallthru
      _
    // Predicated region
    $region6: #{tpu_custom_call.1} parent=1 // pred_check
      _
    $region7: #{tpu_custom_call.1} parent=1 // pred_check_branch
      %19 = sbr.rel (0) target = $region9
    $region8: #{tpu_custom_call.1} parent=1 // pred_region
      %20 = dma.done [#allocation3], 256
    $region9: #{tpu_custom_call.1} parent=1 // pred_fallthru
      _
    %v21 = vld [vmem:[#allocation2] sm:$0xff]
    %v22 = vld [vmem:[#allocation2 + $0x8] sm:$0xff]
    %v25 = vcombine.high %v21, %v21
    %v26 = vcombine.high %v22, %v22
    %vm29 = vcmask 1043456
    %v30 = vsel %vm29, %v21, 0.0
    %v31 = vsel %vm29, %v25, 0.0
    %v32 = vadd.f32 %v30, %v31
    %v33 = vsel %vm29, %v22, 0.0
    %v34 = vadd.f32 %v32, %v33
    %v35 = vsel %vm29, %v26, 0.0
    %v36 = vadd.f32 %v34, %v35
    %37 = vadd.xlane.f32.xlu0 %v36
    %v38 = vpop.xlane.xlu0 %37
    %v39 = vrot.slane %v38, 4
    %v40 = vadd.f32 %v38, %v39
    %v41 = vrot.slane %v40, 2
    %v42 = vadd.f32 %v40, %v41
    %v43 = vrot.slane %v42, 1
    %v44 = vadd.f32 %v42, %v43
    %s45 = vtos %v44
    %s46 = smul.f32 %s45, 0.00048828125
    %v47 = vstv %s46
    %v48 = vsub.f32 %v21, %v47
    %v49 = vsub.f32 %v22, %v47
    %50 = vst [vmem:[#allocation5] sm:$0xff] %v48
    %51 = vst [vmem:[#allocation5 + $0x8] sm:$0xff] %v49
    // Predicated region
    $region10: #{tpu_custom_call.1} parent=1 // pred_check
      _
    $region11: #{tpu_custom_call.1} parent=1 // pred_check_branch
      %53 = sbr.rel (0) target = $region13
    $region12: #{tpu_custom_call.1} parent=1 // pred_region
      %s55 = ssub.s32 256, 256
      %56 = vsyncadd [#allocation4], %s55
      %s58 = sshll.u32 [#allocation5], 4
      %s59 = int_to_ptr.vmem [resolvable:$true] %s58
      %61 = dma.vmem_to_hbm [thread:$0]  %s59, 256, %s1, [#allocation4]
    $region13: #{tpu_custom_call.1} parent=1 // pred_fallthru
      _
    // Predicated region
    $region14: #{tpu_custom_call.1} parent=1 // pred_check
      _
    $region15: #{tpu_custom_call.1} parent=1 // pred_check_branch
      %63 = sbr.rel (0) target = $region17
    $region16: #{tpu_custom_call.1} parent=1 // pred_region
      %64 = dma.done [#allocation4], 256
    $region17: #{tpu_custom_call.1} parent=1 // pred_fallthru
      _
    %65 = vsyncpa [#allocation3], 1
    %66 = vsyncpa [#allocation4], 1

</llo_original>
